<compile_context>
chip_gen: v7x
topology: tpu7x:2x2x1
jax: 0.10.0
libtpu: 0.0.40
codegen_flags: <defaults>
</compile_context>

<pallas_src>
import jax
import jax.numpy as jnp
from jax.experimental import pallas as pl
from jax.experimental.pallas import tpu as pltpu


# ---------------------------------------------------------------------------
# Generation-aware VMEM budgets (only used by the tiled fallback path).
# ---------------------------------------------------------------------------
def _vmem_budget():
    per_buffer = 6 * 1024 * 1024        # 2 in + 2 out double-buffers -> <=24 MiB
    vmem_limit = 32 * 1024 * 1024       # safe under v7x's 64 MiB physical VMEM
    try:
        kind = jax.devices()[0].device_kind.lower()
        if "v5" in kind or "v6" in kind:
            per_buffer = 12 * 1024 * 1024    # 128 MiB physical VMEM -> go bigger
            vmem_limit = 64 * 1024 * 1024
    except Exception:
        pass
    return per_buffer, vmem_limit


# ---------------------------------------------------------------------------
# Primary path: chunked HBM->HBM DMA (no VMEM round trip, no grid steps).
# ---------------------------------------------------------------------------
def _make_hbm_copy_kernel(chunk_bounds):
    """Kernel body: start all chunk DMAs back-to-back, then wait on all."""

    def kernel(x_hbm, o_hbm, sems):
        for idx, (start, size) in enumerate(chunk_bounds):
            pltpu.make_async_copy(
                x_hbm.at[pl.ds(start, size)],
                o_hbm.at[pl.ds(start, size)],
                sems.at[idx],
            ).start()
        for idx, (start, size) in enumerate(chunk_bounds):
            pltpu.make_async_copy(
                x_hbm.at[pl.ds(start, size)],
                o_hbm.at[pl.ds(start, size)],
                sems.at[idx],
            ).wait()

    return kernel


def _identity_hbm_dma(x, max_chunks=4):
    """Identity via direct chunked HBM->HBM DMA."""
    lead = x.shape[0]
    n_chunks = max(1, min(max_chunks, lead))
    base, rem = divmod(lead, n_chunks)
    bounds, start = [], 0
    for i in range(n_chunks):
        size = base + (1 if i < rem else 0)
        bounds.append((start, size))
        start += size

    itemsize = jnp.dtype(x.dtype).itemsize
    return pl.pallas_call(
        _make_hbm_copy_kernel(tuple(bounds)),
        out_shape=jax.ShapeDtypeStruct(x.shape, x.dtype),
        in_specs=[pl.BlockSpec(memory_space=pl.ANY)],
        out_specs=pl.BlockSpec(memory_space=pl.ANY),
        scratch_shapes=[pltpu.SemaphoreType.DMA((n_chunks,))],
        cost_estimate=pl.CostEstimate(
            flops=0,
            transcendentals=0,
            bytes_accessed=2 * x.size * itemsize,
        ),
    )(x)


# ---------------------------------------------------------------------------
# Fallback path: tiled HBM->VMEM->HBM copy (template for a real encoder).
# ---------------------------------------------------------------------------
def _identity_tile_kernel(x_ref, o_ref):
    o_ref[...] = x_ref[...]


def _largest_dividing_multiple(total, unit, cap):
    """Largest multiple of `unit` that divides `total` and is <= cap (0 if none)."""
    t = (min(cap, total) // unit) * unit
    while t >= unit:
        if total % t == 0:
            return t
        t -= unit
    return 0


def _identity_tiled_vmem(x):
    orig_shape = x.shape
    itemsize = jnp.dtype(x.dtype).itemsize
    total = x.size
    per_buffer, vmem_limit = _vmem_budget()
    sublane = max(8, 32 // itemsize)            # 8 (f32) / 16 (bf16) / 32 (i8)
    LANE_CAP = 2048

    # Lane-dense 2D view of the flattened tensor (no padding, no extra HBM
    # passes): widest multiple of 128 that exactly divides the element count.
    cols = _largest_dividing_multiple(total, 128, LANE_CAP)
    if cols:
        rows = total // cols
    else:
        # Element count not a multiple of 128: keep the natural trailing dim;
        # ragged boundary tiles are handled by the cdiv grid (masked stores).
        cols = orig_shape[-1]
        rows = total // cols
    x2d = x.reshape(rows, cols)

    # Lane tile: multiple of 128 (or full extent when cols < 128).
    if cols % 128 == 0:
        col_tile = min(cols, LANE_CAP)
    elif cols > 128:
        col_tile = min((cols // 128) * 128, LANE_CAP)
    else:
        col_tile = cols

    # Sublane tile: dtype-packed, bounded by the per-buffer VMEM budget.
    row_cap = max(sublane,
                  (per_buffer // max(1, col_tile * itemsize)) // sublane * sublane)
    if rows <= sublane:
        row_tile = rows                          # full extent (always legal)
    else:
        row_tile = min(row_cap, (rows // sublane) * sublane)

    grid = (pl.cdiv(rows, row_tile), pl.cdiv(cols, col_tile))

    out = pl.pallas_call(
        _identity_tile_kernel,
        out_shape=jax.ShapeDtypeStruct((rows, cols), x.dtype),
        grid_spec=pltpu.PrefetchScalarGridSpec(
            num_scalar_prefetch=0,
            grid=grid,
            in_specs=[pl.BlockSpec((row_tile, col_tile), lambda i, j: (i, j))],
            out_specs=pl.BlockSpec((row_tile, col_tile), lambda i, j: (i, j)),
        ),
        compiler_params=pltpu.CompilerParams(
            dimension_semantics=("parallel", "parallel"),
            vmem_limit_bytes=vmem_limit,
        ),
        input_output_aliases={0: 0},
        cost_estimate=pl.CostEstimate(
            flops=0,
            transcendentals=0,
            bytes_accessed=2 * rows * cols * itemsize,
        ),
    )(x2d)
    return out.reshape(orig_shape)


# ---------------------------------------------------------------------------
# Dispatcher.
# ---------------------------------------------------------------------------
_HBM_DMA_OK = True   # flipped to False if direct HBM->HBM DMA fails to lower


def pallas_identity(x):
    """Identity pass-through of `x` on TPU via Pallas."""
    global _HBM_DMA_OK
    if x.ndim == 0 or x.size == 0:
        return x
    if _HBM_DMA_OK:
        try:
            return _identity_hbm_dma(x)
        except Exception:
            # Fall back to the tiled VMEM copy if the direct HBM->HBM DMA
            # path does not lower on this generation / runtime.
            _HBM_DMA_OK = False
    return _identity_tiled_vmem(x)


# ---------------------------------------------------------------------------
# Module mirrors.
# ---------------------------------------------------------------------------
class Coder:
    """Base class mirroring train/coders/coder.py::Coder."""

    def __init__(self, ec_k, ec_r, in_dim):
        self.ec_k = ec_k
        self.ec_r = ec_r

    def forward(self, in_data):
        pass


class Encoder(Coder):
    """JAX/Pallas mirror of train/coders/coder.py::Encoder."""

    def __init__(self, ec_k, ec_r, in_dim):
        super().__init__(ec_k, ec_r, in_dim)
        # NOTE: the `len(in_dim) == 100` condition is copied verbatim from the
        # reference (it essentially never triggers there either).
        if len(in_dim) == 100:
            flattened_dim = in_dim[1]
            if int(flattened_dim ** 0.5) ** 2 != flattened_dim:
                raise Exception(
                    "Expected square flattened input, but received flattened "
                    "input of size " + str(flattened_dim)
                )
            sqrt_flattened = int(flattened_dim ** 0.5)
            self.in_dim = [-1, 1, sqrt_flattened, sqrt_flattened]
        else:
            self.in_dim = in_dim

    def forward(self, in_data):
        # TODO(synk): the reference base-class forward is `pass` (returns
        # None); concrete encoder subclasses define the real compute.  Here we
        # run the closest non-trivial equivalent: an identity pass-through of
        # the input via Pallas (chunked HBM->HBM DMA; tiled VMEM copy as the
        # fallback / template for real encoder math).
        return pallas_identity(in_data)

    def resize_transform(self):
        # TODO(synk): torchvision transform hook; no Pallas equivalent.
        return None


if __name__ == "__main__":
    key = jax.random.PRNGKey(0)
    # Small shapes consistent with (batch, num_channels, height, width).
    batch, channels, height, width = 2, 4, 16, 16
    x = jax.random.normal(key, (batch, channels, height, width), dtype=jnp.float32)

    enc = Encoder(ec_k=4, ec_r=2, in_dim=[batch, channels, height, width])
    y = enc.forward(x)
    y = jax.block_until_ready(y)

    # Sanity check: identity pass-through preserves values exactly.
    assert y.shape == x.shape and y.dtype == x.dtype
    assert bool(jnp.all(y == x))
    print("KERNEL_OK")
</pallas_src>

<mosaic_0001>
module attributes {stable_mosaic.version = 11 : i64} {
  func.func @kernel(%arg0: memref<2x4x16x16xf32, #tpu.memory_space<any>>, %arg1: memref<2x4x16x16xf32, #tpu.memory_space<any>>, %arg2: memref<2x!tpu.dma_semaphore, #tpu.memory_space<semaphore_mem>>) attributes {dimension_semantics = [], scalar_prefetch = 0 : i64, scratch_operands = 1 : i64, tpu.core_type = #tpu.core_type<tc>} {
    %c0_i32 = arith.constant 0 : i32
    %c0_i32_0 = arith.constant 0 : i32
    %c0_i32_1 = arith.constant 0 : i32
    %c0_i32_2 = arith.constant 0 : i32
    %c0_i32_3 = arith.constant 0 : i32
    %0 = tpu.memref_slice %arg0[%c0_i32_0, %c0_i32_1, %c0_i32_2, %c0_i32_3] : memref<2x4x16x16xf32, #tpu.memory_space<any>> -> memref<1x4x16x16xf32, #tpu.memory_space<any>>
    %c0_i32_4 = arith.constant 0 : i32
    %c0_i32_5 = arith.constant 0 : i32
    %c0_i32_6 = arith.constant 0 : i32
    %c0_i32_7 = arith.constant 0 : i32
    %1 = tpu.memref_slice %arg1[%c0_i32_4, %c0_i32_5, %c0_i32_6, %c0_i32_7] : memref<2x4x16x16xf32, #tpu.memory_space<any>> -> memref<1x4x16x16xf32, #tpu.memory_space<any>>
    %2 = tpu.memref_slice %arg2[%c0_i32] : memref<2x!tpu.dma_semaphore, #tpu.memory_space<semaphore_mem>> -> memref<1x!tpu.dma_semaphore, #tpu.memory_space<semaphore_mem>>
    %3 = tpu.memref_squeeze %2 : memref<1x!tpu.dma_semaphore, #tpu.memory_space<semaphore_mem>> -> memref<!tpu.dma_semaphore, #tpu.memory_space<semaphore_mem>>
    tpu.enqueue_dma source(%0 : memref<1x4x16x16xf32, #tpu.memory_space<any>>) target(%1 : memref<1x4x16x16xf32, #tpu.memory_space<any>>) target_semaphore(%3 : memref<!tpu.dma_semaphore, #tpu.memory_space<semaphore_mem>>)
    %c1_i32 = arith.constant 1 : i32
    %c1_i32_8 = arith.constant 1 : i32
    %c0_i32_9 = arith.constant 0 : i32
    %c0_i32_10 = arith.constant 0 : i32
    %c0_i32_11 = arith.constant 0 : i32
    %4 = tpu.memref_slice %arg0[%c1_i32_8, %c0_i32_9, %c0_i32_10, %c0_i32_11] : memref<2x4x16x16xf32, #tpu.memory_space<any>> -> memref<1x4x16x16xf32, #tpu.memory_space<any>>
    %c1_i32_12 = arith.constant 1 : i32
    %c0_i32_13 = arith.constant 0 : i32
    %c0_i32_14 = arith.constant 0 : i32
    %c0_i32_15 = arith.constant 0 : i32
    %5 = tpu.memref_slice %arg1[%c1_i32_12, %c0_i32_13, %c0_i32_14, %c0_i32_15] : memref<2x4x16x16xf32, #tpu.memory_space<any>> -> memref<1x4x16x16xf32, #tpu.memory_space<any>>
    %6 = tpu.memref_slice %arg2[%c1_i32] : memref<2x!tpu.dma_semaphore, #tpu.memory_space<semaphore_mem>> -> memref<1x!tpu.dma_semaphore, #tpu.memory_space<semaphore_mem>>
    %7 = tpu.memref_squeeze %6 : memref<1x!tpu.dma_semaphore, #tpu.memory_space<semaphore_mem>> -> memref<!tpu.dma_semaphore, #tpu.memory_space<semaphore_mem>>
    tpu.enqueue_dma source(%4 : memref<1x4x16x16xf32, #tpu.memory_space<any>>) target(%5 : memref<1x4x16x16xf32, #tpu.memory_space<any>>) target_semaphore(%7 : memref<!tpu.dma_semaphore, #tpu.memory_space<semaphore_mem>>)
    %c0_i32_16 = arith.constant 0 : i32
    %c0_i32_17 = arith.constant 0 : i32
    %c0_i32_18 = arith.constant 0 : i32
    %c0_i32_19 = arith.constant 0 : i32
    %c0_i32_20 = arith.constant 0 : i32
    %8 = tpu.memref_slice %arg0[%c0_i32_17, %c0_i32_18, %c0_i32_19, %c0_i32_20] : memref<2x4x16x16xf32, #tpu.memory_space<any>> -> memref<1x4x16x16xf32, #tpu.memory_space<any>>
    %c0_i32_21 = arith.constant 0 : i32
    %c0_i32_22 = arith.constant 0 : i32
    %c0_i32_23 = arith.constant 0 : i32
    %c0_i32_24 = arith.constant 0 : i32
    %9 = tpu.memref_slice %arg1[%c0_i32_21, %c0_i32_22, %c0_i32_23, %c0_i32_24] : memref<2x4x16x16xf32, #tpu.memory_space<any>> -> memref<1x4x16x16xf32, #tpu.memory_space<any>>
    %10 = tpu.memref_slice %arg2[%c0_i32_16] : memref<2x!tpu.dma_semaphore, #tpu.memory_space<semaphore_mem>> -> memref<1x!tpu.dma_semaphore, #tpu.memory_space<semaphore_mem>>
    %11 = tpu.memref_squeeze %10 : memref<1x!tpu.dma_semaphore, #tpu.memory_space<semaphore_mem>> -> memref<!tpu.dma_semaphore, #tpu.memory_space<semaphore_mem>>
    tpu.wait_dma2 semaphore(%11 : memref<!tpu.dma_semaphore, #tpu.memory_space<semaphore_mem>>) src(%8 : memref<1x4x16x16xf32, #tpu.memory_space<any>>) dst(%9 : memref<1x4x16x16xf32, #tpu.memory_space<any>>)
    %c1_i32_25 = arith.constant 1 : i32
    %c1_i32_26 = arith.constant 1 : i32
    %c0_i32_27 = arith.constant 0 : i32
    %c0_i32_28 = arith.constant 0 : i32
    %c0_i32_29 = arith.constant 0 : i32
    %12 = tpu.memref_slice %arg0[%c1_i32_26, %c0_i32_27, %c0_i32_28, %c0_i32_29] : memref<2x4x16x16xf32, #tpu.memory_space<any>> -> memref<1x4x16x16xf32, #tpu.memory_space<any>>
    %c1_i32_30 = arith.constant 1 : i32
    %c0_i32_31 = arith.constant 0 : i32
    %c0_i32_32 = arith.constant 0 : i32
    %c0_i32_33 = arith.constant 0 : i32
    %13 = tpu.memref_slice %arg1[%c1_i32_30, %c0_i32_31, %c0_i32_32, %c0_i32_33] : memref<2x4x16x16xf32, #tpu.memory_space<any>> -> memref<1x4x16x16xf32, #tpu.memory_space<any>>
    %14 = tpu.memref_slice %arg2[%c1_i32_25] : memref<2x!tpu.dma_semaphore, #tpu.memory_space<semaphore_mem>> -> memref<1x!tpu.dma_semaphore, #tpu.memory_space<semaphore_mem>>
    %15 = tpu.memref_squeeze %14 : memref<1x!tpu.dma_semaphore, #tpu.memory_space<semaphore_mem>> -> memref<!tpu.dma_semaphore, #tpu.memory_space<semaphore_mem>>
    tpu.wait_dma2 semaphore(%15 : memref<!tpu.dma_semaphore, #tpu.memory_space<semaphore_mem>>) src(%12 : memref<1x4x16x16xf32, #tpu.memory_space<any>>) dst(%13 : memref<1x4x16x16xf32, #tpu.memory_space<any>>)
    return
  }
}

module attributes {stable_mosaic.version = 11 : i64} {
  func.func @_identity_tile_kernel(%arg0: i32, %arg1: i32, %arg2: memref<1x2048xf32, #tpu.memory_space<vmem>>, %arg3: memref<1x2048xf32, #tpu.memory_space<vmem>>) attributes {dimension_semantics = [#tpu.dimension_semantics<parallel>, #tpu.dimension_semantics<parallel>], iteration_bounds = array<i64: 1, 1>, scalar_prefetch = 0 : i64, scratch_operands = 0 : i64, tpu.core_type = #tpu.core_type<tc>, window_params = [{transform_indices = @transform_0, window_bounds = array<i64: 1, 2048>}, {transform_indices = @transform_1, window_bounds = array<i64: 1, 2048>}]} {
    %c0 = arith.constant 0 : index
    %c0_0 = arith.constant 0 : index
    %0 = vector.load %arg2[%c0, %c0_0] : memref<1x2048xf32, #tpu.memory_space<vmem>>, vector<1x2048xf32>
    %c0_1 = arith.constant 0 : index
    %c0_2 = arith.constant 0 : index
    %1 = vector.load %arg3[%c0_1, %c0_2] : memref<1x2048xf32, #tpu.memory_space<vmem>>, vector<1x2048xf32>
    tpu.vector_store %arg3[%c0_1, %c0_2], %0 {strides = array<i32>} : memref<1x2048xf32, #tpu.memory_space<vmem>>, vector<1x2048xf32>,
    return
  }
  func.func @transform_0(%arg0: i32, %arg1: i32) -> (i32, i32) {
    %c0_i32 = arith.constant 0 : i32
    return %arg0, %arg1 : i32, i32
  }
  func.func @transform_1(%arg0: i32, %arg1: i32) -> (i32, i32) {
    %c0_i32 = arith.constant 0 : i32
    return %arg0, %arg1 : i32, i32
  }
}

</mosaic_0001>

<llo_original>
// kernel: tpu_custom_call.1
$region0: #{tpu_custom_call.1}
  #allocation0 [shape = 'u32[]', space=smem, size = 0x4, offset = 0x4, fixed_abs, tag = 'smem constant byte address 0x4 - core index']
  #allocation1 [shape = 'u32[144,128]{1,0:T(1,128)}', space=vmem, size = 0x12000, scoped, tag = 'internal scratch']
  %s0 = inlined_call_operand.hbm [shape: f32[1,2048], index: 0, kind: input, shape index: {}, may-alias: {0,1}]
  %s1 = inlined_call_operand.hbm [shape: f32[1,2048], index: 1, kind: output, shape index: {}, may-alias: {0,1}]
  %s2 = sld [smem:[#allocation0]]
  $region18: #{tpu_custom_call.1} parent=0
    _
  %s4 = ssub.s32 1, %s2
  %s5 = scalar_select 0, %s4, %s2
  $region1: #{tpu_custom_call.1} parent=0
    #allocation2 [shape = 'u8[8192]{0}', space=vmem, size = 0x2000, scoped, tag = 'input window, operand 0, single buffered']
    #allocation3 [shape = 's32[1]{0}', space=sflag, size = 0x4, scoped, tag = 'scoped memory for tpu_custom_call.1']
    #allocation4 [shape = 's32[1]{0}', space=sflag, size = 0x4, scoped, tag = 'scoped memory for tpu_custom_call.1']
    #allocation5 [shape = 'u8[8192]{0}', space=vmem, size = 0x2000, scoped, tag = 'output window, operand 0, single buffered']
    %6 = vsyncpa [#allocation3], 0
    %7 = vsyncpa [#allocation4], 0
    // Predicated region
    $region2: #{tpu_custom_call.1} parent=1 // pred_check
      _
    $region3: #{tpu_custom_call.1} parent=1 // pred_check_branch
      %9 = sbr.rel (0) target = $region5
    $region4: #{tpu_custom_call.1} parent=1 // pred_region
      %s11 = ssub.s32 256, 256
      %12 = vsyncadd [#allocation3], %s11
      %s14 = sshll.u32 [#allocation2], 4
      %s15 = int_to_ptr.vmem [resolvable:$true] %s14
      %17 = dma.hbm_to_vmem [thread:$0]  %s0, 256, %s15, [#allocation3]
    $region5: #{tpu_custom_call.1} parent=1 // pred_fallthru
      _
    // Predicated region
    $region6: #{tpu_custom_call.1} parent=1 // pred_check
      _
    $region7: #{tpu_custom_call.1} parent=1 // pred_check_branch
      %19 = sbr.rel (0) target = $region9
    $region8: #{tpu_custom_call.1} parent=1 // pred_region
      %20 = dma.done [#allocation3], 256
    $region9: #{tpu_custom_call.1} parent=1 // pred_fallthru
      _
    %v21 = vld [vmem:[#allocation2] sm:$0xff]
    %v22 = vld [vmem:[#allocation2 + $0x8] sm:$0xff]
    %23 = vst [vmem:[#allocation5] sm:$0xff] %v21
    %24 = vst [vmem:[#allocation5 + $0x8] sm:$0xff] %v22
    // Predicated region
    $region10: #{tpu_custom_call.1} parent=1 // pred_check
      _
    $region11: #{tpu_custom_call.1} parent=1 // pred_check_branch
      %26 = sbr.rel (0) target = $region13
    $region12: #{tpu_custom_call.1} parent=1 // pred_region
      %s28 = ssub.s32 256, 256
      %29 = vsyncadd [#allocation4], %s28
      %s31 = sshll.u32 [#allocation5], 4
      %s32 = int_to_ptr.vmem [resolvable:$true] %s31
      %34 = dma.vmem_to_hbm [thread:$0]  %s32, 256, %s1, [#allocation4]
    $region13: #{tpu_custom_call.1} parent=1 // pred_fallthru
      _
    // Predicated region
    $region14: #{tpu_custom_call.1} parent=1 // pred_check
      _
    $region15: #{tpu_custom_call.1} parent=1 // pred_check_branch
      %36 = sbr.rel (0) target = $region17
    $region16: #{tpu_custom_call.1} parent=1 // pred_region
      %37 = dma.done [#allocation4], 256
    $region17: #{tpu_custom_call.1} parent=1 // pred_fallthru
      _
    %38 = vsyncpa [#allocation3], 1
    %39 = vsyncpa [#allocation4], 1

</llo_original>
